<compile_context>
chip_gen: v7x
topology: tpu7x:2x2x1
jax: 0.10.0
libtpu: 0.0.40
codegen_flags: <defaults>
</compile_context>

<pallas_src>
import jax
import jax.numpy as jnp
from jax.experimental import pallas as pl
from jax.experimental.pallas import tpu as pltpu


def _round_up(n, m):
    return ((n + m - 1) // m) * m


def _cdiv(a, b):
    return (a + b - 1) // b


def _physical_vmem_bytes():
    """Best-effort physical VMEM size with a generation-aware fallback."""
    try:
        info = pltpu.get_tpu_info()
        v = getattr(info, "vmem_capacity_bytes", None)
        if v:
            return int(v)
    except Exception:
        pass
    try:
        kind = jax.devices()[0].device_kind.lower()
        if "v7" in kind:
            return 64 * 1024 * 1024
        if any(t in kind for t in ("v4", "v5", "v6")):
            return 128 * 1024 * 1024
    except Exception:
        pass
    return 64 * 1024 * 1024          # conservative (v7x-sized) default


def _vmem_limit(bytes_needed, budget):
    hi = int(0.95 * budget)
    return int(max(min(bytes_needed + (4 << 20), hi), min(32 << 20, hi)))


def _vmem_tile_bytes(rows, cols, dtype):
    """Padded VMEM footprint of a (rows, cols) tile (sublane/lane tiling)."""
    itemsize = jnp.dtype(dtype).itemsize
    sub = max(8, 32 // itemsize)     # 8 rows for f32, 16 for bf16, 32 for int8
    return _round_up(max(rows, 1), sub) * _round_up(max(cols, 1), 128) * itemsize


# ---------------------------------------------------------------------------
# Fused single-pass kernel (auto-pipelined): whole per-batch slab per block.
# ---------------------------------------------------------------------------
def _se_fused_kernel(x_ref, w1_ref, b1_ref, w2_ref, b2_ref, o_ref):
    # x_ref: (1, C, S) slab for one batch element (C on sublanes, S on lanes).
    # Squeeze: f32-accumulated lane sum; 1/S is folded into w1, and no f32
    # copy of the slab is ever materialized (keeps VMEM use at the declared
    # 4x-slab budget even for bf16 inputs).
    pooled = jnp.sum(x_ref[...], axis=-1, keepdims=True, dtype=jnp.float32)[0]   # (C, 1)
    # Excite: 1x1x1 convs == tiny matmuls against the (C, 1) column; the gate
    # stays sublane-major so no relayout is needed before the multiply.
    # (N=1 matvecs; MXU drain is hidden under the slab DMA, so jnp.dot is fine.)
    z = jnp.dot(w1_ref[...], pooled, preferred_element_type=jnp.float32) + b1_ref[...]
    z = jnp.maximum(z, 0.0)                                                       # (Cr, 1)
    g = jnp.dot(w2_ref[...], z, preferred_element_type=jnp.float32) + b2_ref[...]
    g = jax.nn.sigmoid(g)                                                         # (C, 1) f32
    # Scale in x's dtype (gate cast down once) -> no second full-slab temp.
    o_ref[...] = x_ref[...] * g.astype(o_ref.dtype)[None, :, :]


# ---------------------------------------------------------------------------
# Manual single-pass kernel: slab resident once in VMEM, x/out stay in HBM.
# Used when the auto-pipeline's 4x-slab buffering does not fit (e.g. v7x).
# ---------------------------------------------------------------------------
def _se_manual_kernel(x_hbm, w1_ref, b1_ref, w2_ref, b2_ref, o_hbm, slab, sem):
    b = pl.program_id(0)
    cp_in = pltpu.make_async_copy(x_hbm.at[b], slab, sem)
    cp_in.start()
    cp_in.wait()
    pooled = jnp.sum(slab[...], axis=-1, keepdims=True, dtype=jnp.float32)        # (C, 1)
    z = jnp.maximum(
        jnp.dot(w1_ref[...], pooled, preferred_element_type=jnp.float32) + b1_ref[...], 0.0)
    g = jax.nn.sigmoid(
        jnp.dot(w2_ref[...], z, preferred_element_type=jnp.float32) + b2_ref[...])
    slab[...] = slab[...] * g.astype(slab.dtype)          # in-place scale
    cp_out = pltpu.make_async_copy(slab, o_hbm.at[b], sem)
    cp_out.start()
    cp_out.wait()


# ---------------------------------------------------------------------------
# Two-pass fallback kernels (slab too large for VMEM even once).
# ---------------------------------------------------------------------------
def _make_pool_sum_kernel(S, t_s, n_s_per, ragged):
    def kernel(x_ref, sum_ref):
        # grid = (B, split, n_s_per); s is the (last, "arbitrary") reduction
        # axis; the (1, 1, C, 1) output block is resident across s.
        @pl.when(pl.program_id(2) == 0)
        def _():
            sum_ref[...] = jnp.zeros_like(sum_ref)

        x = x_ref[...]                                                  # (1, C, t_s)
        if ragged:
            # Mask the tail tile: contents beyond S are undefined (no HBM pad).
            blk = pl.program_id(1) * n_s_per + pl.program_id(2)
            lane = jax.lax.broadcasted_iota(jnp.int32, x.shape, 2)
            x = jnp.where(blk * t_s + lane < S, x, jnp.zeros_like(x))
        sum_ref[...] += jnp.sum(x, axis=-1, keepdims=True, dtype=jnp.float32)[None]

    return kernel


def _scale_kernel(x_ref, g_ref, o_ref):
    # x_ref: (1, C, t_s), g_ref: (1, C, 1) gate (already in x's dtype).
    # Multiply in x's dtype; OOB lanes of a ragged tail tile are masked on store.
    o_ref[...] = x_ref[...] * g_ref[...]


# ---------------------------------------------------------------------------
# Wrapper
# ---------------------------------------------------------------------------
def channel_se_layer(x, w_down, b_down, w_up, b_up, *, mode=None, spatial_tile=None):
    """Squeeze-and-Excitation forward.

    x:      (B, C, D, H, W)   (f32 or bf16; pooled/gate math is always f32)
    w_down: (Cr, C)  == PyTorch conv_down.weight.reshape(Cr, C)
    b_down: (Cr,)
    w_up:   (C, Cr)  == PyTorch conv_up.weight.reshape(C, Cr)
    b_up:   (C,)
    mode:   None (auto) | "fused" | "manual" | "two_pass"
    """
    B, C, D, H, W = x.shape
    Cr = w_down.shape[0]
    S = D * H * W
    itemsize = jnp.dtype(x.dtype).itemsize
    budget = _physical_vmem_bytes()

    # ---- path selection (dtype-aware padded VMEM footprints) ----------------
    slab_vmem = _vmem_tile_bytes(C, S, x.dtype)
    weight_vmem = (_vmem_tile_bytes(Cr, C, jnp.float32) + _vmem_tile_bytes(C, Cr, jnp.float32)
                   + _vmem_tile_bytes(Cr, 1, jnp.float32) + _vmem_tile_bytes(C, 1, jnp.float32))
    auto_need = 4 * slab_vmem + 2 * weight_vmem + (2 << 20)     # 2x in + 2x out bufs
    manual_need = slab_vmem + 2 * weight_vmem + (2 << 20)       # 1x resident slab

    if mode is None:
        if auto_need <= int(0.8 * budget):
            mode = "fused"
        elif manual_need <= int(0.8 * budget):
            mode = "manual"
        else:
            mode = "two_pass"

    # (B, C, D, H, W) -> (B, C, S): free reshape of a contiguous tensor; no
    # HBM pad / slice round-trips anywhere below.
    x_flat = x.reshape(B, C, S)

    if mode in ("fused", "manual"):
        w1 = w_down.astype(jnp.float32) / float(S)               # fold the mean's 1/S
        b1 = b_down.astype(jnp.float32).reshape(Cr, 1)
        w2 = w_up.astype(jnp.float32)
        b2 = b_up.astype(jnp.float32).reshape(C, 1)
        weight_specs = [
            pl.BlockSpec((Cr, C), lambda b: (0, 0)),             # w_down / S
            pl.BlockSpec((Cr, 1), lambda b: (0, 0)),             # b_down
            pl.BlockSpec((C, Cr), lambda b: (0, 0)),             # w_up
            pl.BlockSpec((C, 1), lambda b: (0, 0)),              # b_up
        ]

    if mode == "fused":
        # ---- fused single-pass (bandwidth-optimal: 2x x-bytes of HBM) -------
        out_flat = pl.pallas_call(
            _se_fused_kernel,
            out_shape=jax.ShapeDtypeStruct((B, C, S), x.dtype),
            grid_spec=pltpu.PrefetchScalarGridSpec(
                num_scalar_prefetch=0,
                grid=(B,),
                in_specs=[pl.BlockSpec((1, C, S), lambda b: (b, 0, 0))] + weight_specs,
                out_specs=pl.BlockSpec((1, C, S), lambda b: (b, 0, 0)),
            ),
            compiler_params=pltpu.CompilerParams(
                dimension_semantics=("parallel",),
                vmem_limit_bytes=_vmem_limit(auto_need, budget),
            ),
            input_output_aliases={0: 0},        # reuse the x buffer for the output
        )(x_flat, w1, b1, w2, b2)
        return out_flat.reshape(B, C, D, H, W)

    if mode == "manual":
        # ---- manual single-pass: 1x slab resident, explicit HBM<->VMEM DMA --
        # TODO(synk): could also alias x->out and double-buffer the writeback
        # tiles to overlap the scale with the outbound DMA; kept simple here.
        out_flat = pl.pallas_call(
            _se_manual_kernel,
            out_shape=jax.ShapeDtypeStruct((B, C, S), x.dtype),
            grid_spec=pltpu.PrefetchScalarGridSpec(
                num_scalar_prefetch=0,
                grid=(B,),
                in_specs=[pl.BlockSpec(memory_space=pl.ANY)] + weight_specs,
                out_specs=pl.BlockSpec(memory_space=pl.ANY),
                scratch_shapes=[pltpu.VMEM((C, S), x.dtype),
                                pltpu.SemaphoreType.DMA],
            ),
            compiler_params=pltpu.CompilerParams(
                dimension_semantics=("parallel",),
                vmem_limit_bytes=_vmem_limit(manual_need, budget),
            ),
        )(x_flat, w1, b1, w2, b2)
        return out_flat.reshape(B, C, D, H, W)

    # ---- two-pass fallback ---------------------------------------------------
    sub = max(8, 32 // itemsize)
    c_pad = _round_up(C, sub)
    if spatial_tile is None:
        # ~8 MiB tiles on 64 MiB parts, ~16 MiB on 128 MiB parts (amortizes the
        # ~0.35 us per-grid-step overhead); clamp so 4 double-buffered tiles fit.
        tgt = (16 << 20) if budget >= (96 << 20) else (8 << 20)
        t_s = _round_up(max(tgt // (c_pad * itemsize), 128), 128)
        max_ts = max(((int(0.5 * budget) // (4 * c_pad * itemsize)) // 128) * 128, 128)
        t_s = min(t_s, max_ts)
    else:
        t_s = _round_up(spatial_tile, 128)
    t_s = min(t_s, _round_up(S, 128))
    nS = _cdiv(S, t_s)
    ragged = (S % t_s) != 0
    tile_vmem = _vmem_tile_bytes(C, t_s, x.dtype)

    # 2-way "parallel" spatial split (when it divides cleanly) so both v7x
    # TensorCores get pool-pass work even at B == 1; a no-op on 1-TC chips.
    split = 2 if (nS >= 2 and nS % 2 == 0) else 1
    n_s_per = nS // split

    # Pass 1: pooled-sum reduction over spatial tiles (partial sums per split).
    partial = pl.pallas_call(
        _make_pool_sum_kernel(S, t_s, n_s_per, ragged),
        out_shape=jax.ShapeDtypeStruct((B, split, C, 1), jnp.float32),
        grid_spec=pltpu.PrefetchScalarGridSpec(
            num_scalar_prefetch=0,
            grid=(B, split, n_s_per),
            in_specs=[pl.BlockSpec((1, C, t_s),
                                   lambda b, p, s: (b, 0, p * n_s_per + s))],
            out_specs=pl.BlockSpec((1, 1, C, 1), lambda b, p, s: (b, p, 0, 0)),
        ),
        compiler_params=pltpu.CompilerParams(
            dimension_semantics=("parallel", "parallel", "arbitrary"),
            vmem_limit_bytes=_vmem_limit(2 * tile_vmem + (1 << 20), budget),
        ),
    )(x_flat)

    # Excite MLP, batched over B in plain JAX (one real matmul instead of B
    # M=1 matmuls inside the pipelined loop); all f32.
    pooled = jnp.sum(partial, axis=1)[:, :, 0] * (1.0 / float(S))                 # (B, C)
    z = jnp.maximum(pooled @ w_down.astype(jnp.float32).T
                    + b_down.astype(jnp.float32), 0.0)                            # (B, Cr)
    g = jax.nn.sigmoid(z @ w_up.astype(jnp.float32).T
                       + b_up.astype(jnp.float32))                                # (B, C)
    gate = g.astype(x.dtype)[:, :, None]                                          # (B, C, 1)

    # Pass 2: scale; both grid axes fully parallel (v7x: 2 TensorCores).
    out_flat = pl.pallas_call(
        _scale_kernel,
        out_shape=jax.ShapeDtypeStruct((B, C, S), x.dtype),
        grid_spec=pltpu.PrefetchScalarGridSpec(
            num_scalar_prefetch=0,
            grid=(B, nS),
            in_specs=[
                pl.BlockSpec((1, C, t_s), lambda b, s: (b, 0, s)),    # x tile
                pl.BlockSpec((1, C, 1), lambda b, s: (b, 0, 0)),      # gate column
            ],
            out_specs=pl.BlockSpec((1, C, t_s), lambda b, s: (b, 0, s)),
        ),
        compiler_params=pltpu.CompilerParams(
            dimension_semantics=("parallel", "parallel"),
            vmem_limit_bytes=_vmem_limit(4 * tile_vmem + (1 << 20), budget),
        ),
        input_output_aliases={0: 0},            # reuse the x buffer for the output
    )(x_flat, gate)
    return out_flat.reshape(B, C, D, H, W)


# ---------------------------------------------------------------------------
# Plain-JAX reference mirroring the PyTorch forward.
# ---------------------------------------------------------------------------
def _reference(x, w_down, b_down, w_up, b_up):
    xf = x.astype(jnp.float32)
    pooled = jnp.mean(xf, axis=(2, 3, 4))                                         # (B, C)
    z = jnp.maximum(pooled @ w_down.astype(jnp.float32).T
                    + b_down.astype(jnp.float32), 0.0)                            # (B, Cr)
    g = jax.nn.sigmoid(z @ w_up.astype(jnp.float32).T
                       + b_up.astype(jnp.float32))                                # (B, C)
    return (xf * g[:, :, None, None, None]).astype(x.dtype)


def _make_inputs(key, B, C, Cr, D, H, W):
    k_x, k_w1, k_b1, k_w2, k_b2 = jax.random.split(key, 5)
    x = jax.random.normal(k_x, (B, C, D, H, W), dtype=jnp.float32)
    # PyTorch Conv3d weight layouts (squeezed): (Cr, C) and (C, Cr).
    w_down = 0.1 * jax.random.normal(k_w1, (Cr, C), dtype=jnp.float32)
    b_down = 0.1 * jax.random.normal(k_b1, (Cr,), dtype=jnp.float32)
    w_up = 0.1 * jax.random.normal(k_w2, (C, Cr), dtype=jnp.float32)
    b_up = 0.1 * jax.random.normal(k_b2, (C,), dtype=jnp.float32)
    return x, w_down, b_down, w_up, b_up


if __name__ == "__main__":
    key = jax.random.PRNGKey(0)
    k1, k2, k3 = jax.random.split(key, 3)

    # 1) lane-aligned spatial (S = 4*8*8 = 256) -> auto-selected fused path.
    x, w1, b1, w2, b2 = _make_inputs(k1, B=2, C=8, Cr=4, D=4, H=8, W=8)
    ref = _reference(x, w1, b1, w2, b2)
    out = jax.block_until_ready(channel_se_layer(x, w1, b1, w2, b2))
    assert out.shape == x.shape and out.dtype == x.dtype
    assert jnp.allclose(out, ref, atol=1e-5, rtol=1e-5), "fused (aligned) mismatch"

    # 2) ragged spatial (S = 320): fused path with a full-dim (non-128-multiple)
    #    block, i.e. no HBM pad / output slice; plus the manual DMA path.
    x, w1, b1, w2, b2 = _make_inputs(k2, B=2, C=8, Cr=4, D=4, H=8, W=10)
    ref = _reference(x, w1, b1, w2, b2)
    out = jax.block_until_ready(channel_se_layer(x, w1, b1, w2, b2, mode="fused"))
    assert jnp.allclose(out, ref, atol=1e-5, rtol=1e-5), "fused (ragged) mismatch"
    out = jax.block_until_ready(channel_se_layer(x, w1, b1, w2, b2, mode="manual"))
    assert jnp.allclose(out, ref, atol=1e-5, rtol=1e-5), "manual mismatch"

    # 3) ragged spatial (S = 416 -> 4 tiles of 128, 2-way parallel split, masked
    #    tail tile) through the tiled two-pass fallback.
    x, w1, b1, w2, b2 = _make_inputs(k3, B=2, C=8, Cr=4, D=4, H=8, W=13)
    ref = _reference(x, w1, b1, w2, b2)
    out = jax.block_until_ready(
        channel_se_layer(x, w1, b1, w2, b2, mode="two_pass", spatial_tile=128))
    assert out.shape == x.shape and out.dtype == x.dtype
    assert jnp.allclose(out, ref, atol=1e-5, rtol=1e-5), "two-pass mismatch"

    print("KERNEL_OK")
</pallas_src>

<mosaic_0001>
module attributes {stable_mosaic.version = 11 : i64} {
  func.func @_se_fused_kernel(%arg0: i32, %arg1: memref<1x8x256xf32, #tpu.memory_space<vmem>>, %arg2: memref<4x8xf32, #tpu.memory_space<vmem>>, %arg3: memref<4x1xf32, #tpu.memory_space<vmem>>, %arg4: memref<8x4xf32, #tpu.memory_space<vmem>>, %arg5: memref<8x1xf32, #tpu.memory_space<vmem>>, %arg6: memref<1x8x256xf32, #tpu.memory_space<vmem>>) attributes {dimension_semantics = [#tpu.dimension_semantics<parallel>], iteration_bounds = array<i64: 2>, scalar_prefetch = 0 : i64, scratch_operands = 0 : i64, tpu.core_type = #tpu.core_type<tc>, window_params = [{transform_indices = @transform_0, window_bounds = array<i64: 1, 8, 256>}, {pipeline_mode = #tpu.pipeline_mode<synchronous>, transform_indices = @transform_1, window_bounds = array<i64: 4, 8>}, {pipeline_mode = #tpu.pipeline_mode<synchronous>, transform_indices = @transform_2, window_bounds = array<i64: 4, 1>}, {pipeline_mode = #tpu.pipeline_mode<synchronous>, transform_indices = @transform_3, window_bounds = array<i64: 8, 4>}, {pipeline_mode = #tpu.pipeline_mode<synchronous>, transform_indices = @transform_4, window_bounds = array<i64: 8, 1>}, {transform_indices = @transform_5, window_bounds = array<i64: 1, 8, 256>}]} {
    %c0 = arith.constant 0 : index
    %c0_0 = arith.constant 0 : index
    %c0_1 = arith.constant 0 : index
    %0 = vector.load %arg1[%c0, %c0_0, %c0_1] : memref<1x8x256xf32, #tpu.memory_space<vmem>>, vector<1x8x256xf32>
    %cst = arith.constant dense<0.000000e+00> : vector<1x8xf32>
    %1 = vector.multi_reduction <add>, %0, %cst [2] : vector<1x8x256xf32> to vector<1x8xf32>
    %2 = vector.shape_cast %1 : vector<1x8xf32> to vector<1x8x1xf32>
    %3 = vector.shape_cast %2 : vector<1x8x1xf32> to vector<8x1xf32>
    %c0_2 = arith.constant 0 : index
    %c0_3 = arith.constant 0 : index
    %4 = vector.load %arg2[%c0_2, %c0_3] : memref<4x8xf32, #tpu.memory_space<vmem>>, vector<4x8xf32>
    %cst_4 = arith.constant dense<0.000000e+00> : vector<4x1xf32>
    %5 = tpu.matmul %4, %3, %cst_4 {dimension_numbers = #tpu.dot_dimension_numbers<[1], [0], [0], [1], [0, 0, 1, 1], [], []>} : vector<4x8xf32>, vector<8x1xf32>, vector<4x1xf32> -> vector<4x1xf32>
    %c0_5 = arith.constant 0 : index
    %c0_6 = arith.constant 0 : index
    %6 = vector.load %arg3[%c0_5, %c0_6] : memref<4x1xf32, #tpu.memory_space<vmem>>, vector<4x1xf32>
    %7 = arith.addf %5, %6 : vector<4x1xf32>
    %cst_7 = arith.constant 0.000000e+00 : f32
    %8 = vector.broadcast %cst_7 : f32 to vector<4x1xf32>
    %9 = arith.maximumf %7, %8 : vector<4x1xf32>
    %c0_8 = arith.constant 0 : index
    %c0_9 = arith.constant 0 : index
    %10 = vector.load %arg4[%c0_8, %c0_9] : memref<8x4xf32, #tpu.memory_space<vmem>>, vector<8x4xf32>
    %cst_10 = arith.constant dense<0.000000e+00> : vector<8x1xf32>
    %11 = tpu.matmul %10, %9, %cst_10 {dimension_numbers = #tpu.dot_dimension_numbers<[1], [0], [0], [1], [0, 0, 1, 1], [], []>} : vector<8x4xf32>, vector<4x1xf32>, vector<8x1xf32> -> vector<8x1xf32>
    %c0_11 = arith.constant 0 : index
    %c0_12 = arith.constant 0 : index
    %12 = vector.load %arg5[%c0_11, %c0_12] : memref<8x1xf32, #tpu.memory_space<vmem>>, vector<8x1xf32>
    %13 = arith.addf %11, %12 : vector<8x1xf32>
    %14 = arith.negf %13 : vector<8x1xf32>
    %15 = math.exp %14 : vector<8x1xf32>
    %cst_13 = arith.constant 1.000000e+00 : f32
    %16 = vector.broadcast %cst_13 : f32 to vector<8x1xf32>
    %17 = arith.addf %16, %15 : vector<8x1xf32>
    %18 = arith.divf %16, %17 : vector<8x1xf32>
    %c0_14 = arith.constant 0 : index
    %c0_15 = arith.constant 0 : index
    %c0_16 = arith.constant 0 : index
    %19 = vector.load %arg1[%c0_14, %c0_15, %c0_16] : memref<1x8x256xf32, #tpu.memory_space<vmem>>, vector<1x8x256xf32>
    %20 = vector.shape_cast %18 : vector<8x1xf32> to vector<1x8x1xf32>
    %21 = vector.broadcast %20 : vector<1x8x1xf32> to vector<1x8x256xf32>
    %22 = arith.mulf %19, %21 : vector<1x8x256xf32>
    %c0_17 = arith.constant 0 : index
    %c0_18 = arith.constant 0 : index
    %c0_19 = arith.constant 0 : index
    %23 = vector.load %arg6[%c0_17, %c0_18, %c0_19] : memref<1x8x256xf32, #tpu.memory_space<vmem>>, vector<1x8x256xf32>
    tpu.vector_store %arg6[%c0_17, %c0_18, %c0_19], %22 {strides = array<i32>} : memref<1x8x256xf32, #tpu.memory_space<vmem>>, vector<1x8x256xf32>,
    return
  }
  func.func @transform_0(%arg0: i32) -> (i32, i32, i32) {
    %c0_i32 = arith.constant 0 : i32
    %c0_i32_0 = arith.constant 0 : i32
    %c0_i32_1 = arith.constant 0 : i32
    return %arg0, %c0_i32, %c0_i32_0 : i32, i32, i32
  }
  func.func @transform_1(%arg0: i32) -> (i32, i32) {
    %c0_i32 = arith.constant 0 : i32
    %c0_i32_0 = arith.constant 0 : i32
    %c0_i32_1 = arith.constant 0 : i32
    return %c0_i32, %c0_i32_0 : i32, i32
  }
  func.func @transform_2(%arg0: i32) -> (i32, i32) {
    %c0_i32 = arith.constant 0 : i32
    %c0_i32_0 = arith.constant 0 : i32
    %c0_i32_1 = arith.constant 0 : i32
    return %c0_i32, %c0_i32_0 : i32, i32
  }
  func.func @transform_3(%arg0: i32) -> (i32, i32) {
    %c0_i32 = arith.constant 0 : i32
    %c0_i32_0 = arith.constant 0 : i32
    %c0_i32_1 = arith.constant 0 : i32
    return %c0_i32, %c0_i32_0 : i32, i32
  }
  func.func @transform_4(%arg0: i32) -> (i32, i32) {
    %c0_i32 = arith.constant 0 : i32
    %c0_i32_0 = arith.constant 0 : i32
    %c0_i32_1 = arith.constant 0 : i32
    return %c0_i32, %c0_i32_0 : i32, i32
  }
  func.func @transform_5(%arg0: i32) -> (i32, i32, i32) {
    %c0_i32 = arith.constant 0 : i32
    %c0_i32_0 = arith.constant 0 : i32
    %c0_i32_1 = arith.constant 0 : i32
    return %arg0, %c0_i32, %c0_i32_0 : i32, i32, i32
  }
}

</mosaic_0001>

<llo_original>
// kernel: tpu_custom_call.1
$region0: #{tpu_custom_call.1}
  #allocation0 [shape = 'u32[]', space=smem, size = 0x4, offset = 0x4, fixed_abs, tag = 'smem constant byte address 0x4 - core index']
  #allocation1 [shape = 'u32[144,128]{1,0:T(1,128)}', space=vmem, size = 0x12000, scoped, tag = 'internal scratch']
  %s0 = inlined_call_operand.hbm [shape: f32[2,8,256], index: 0, kind: input, shape index: {}, may-alias: {0,5}]
  %s1 = inlined_call_operand.vmem [shape: f32[4,8], index: 1, kind: input, shape index: {}]
  %s2 = inlined_call_operand.vmem [shape: f32[4,1], index: 2, kind: input, shape index: {}]
  %s3 = inlined_call_operand.vmem [shape: f32[8,4], index: 3, kind: input, shape index: {}]
  %s4 = inlined_call_operand.vmem [shape: f32[8,1], index: 4, kind: input, shape index: {}]
  %s5 = inlined_call_operand.hbm [shape: f32[2,8,256], index: 5, kind: output, shape index: {}, may-alias: {0,5}]
  %s6 = sld [smem:[#allocation0]]
  $region57: #{tpu_custom_call.1} parent=0
    _
  %s8 = ssub.s32 1, %s6
  %s9 = scalar_select 0, %s8, %s6
  $region1: #{tpu_custom_call.1} parent=0
    #allocation2 [shape = 'u8[16384]{0}', space=vmem, size = 0x4000, scoped, tag = 'input window, operand 0']
    #allocation3 [shape = 's32[2]{0}', space=sflag, size = 0x8, scoped, tag = 'scoped memory for tpu_custom_call.1']
    #allocation4 [shape = 's32[2]{0}', space=sflag, size = 0x8, scoped, tag = 'scoped memory for tpu_custom_call.1']
    #allocation5 [shape = 'u8[16384]{0}', space=vmem, size = 0x4000, scoped, tag = 'output window, operand 0']
    %10 = vsyncpa [#allocation3], 0
    %s11 = scalar_lea.sflag [#allocation3], 1
    %12 = vsyncpa %s11, 0
    %13 = vsyncpa [#allocation4], 0
    %s14 = scalar_lea.sflag [#allocation4], 1
    %15 = vsyncpa %s14, 0
    loop: start=0, step=1, limit=4
    $region2: #{tpu_custom_call.1} parent=1 // loop_pre_header
      _
    $region3: #{tpu_custom_call.1} parent=1 // loop_header
      %s17 = sphi 0, %s21
      %p18 = scmp.ge.s32.totalorder %s17, 4
      %s27 = sphi 0, %s29
      %s30 = sphi 0, %s27
      %s31 = sphi 0, %s30
      %s47 = sphi 0, %s31
      %s51 = sphi 0, %s51
      %s53 = sphi 0, %s51
      %s54 = sphi 0, %s53
      %s68 = sphi 0, %s54
      %s72 = sphi 0, %s72
      %s74 = sphi 0, %s72
      %s75 = sphi 0, %s74
      %s89 = sphi 0, %s75
      %s93 = sphi 0, %s93
      %s95 = sphi 0, %s93
      %s96 = sphi 0, %s95
      %s110 = sphi 0, %s96
      %s114 = sphi 0, %s114
      %s116 = sphi 0, %s114
      %s117 = sphi 0, %s116
      %s131 = sphi 0, %s117
      %s137 = sphi 0, %s139
      %s140 = sphi 0, %s137
      %s141 = sphi 0, %s140
      %s157 = sphi 0, %s141
    $region4: #{tpu_custom_call.1} parent=1 // loop_header_branch
      %20 = sbr.rel (%p18) target = $region8
    $region5: #{tpu_custom_call.1} parent=1 // loop_body
      %s22 = ssub.s32 %s17, 1
      %s23 = ssub.s32 %s17, 2
      %s24 = sadd.s32 %s17, 1
      %s25 = ssub.s32 %s17, %s24
      %p26 = scmp.eq.s32.totalorder %s25, 0
      %s28 = sadd.s32 %s27, 1
      %s29 = scalar_select %p26, %s27, %s28
      %p32 = pneg %p26
      %p33 = scmp.eq.s32.totalorder %s17, 1
      %p34 = por %p32, %p33
      %p35 = scmp.ne.s32.totalorder %s27, %s30
      %p36 = scmp.eq.s32.totalorder %s17, 0
      %p37 = por %p35, %p36
      %p38 = scmp.ne.s32.totalorder %s27, %s30
      %p39 = scmp.eq.s32.totalorder %s22, 1
      %p40 = por %p38, %p39
      %p41 = scmp.ne.s32.totalorder %s30, %s31
      %p42 = scmp.eq.s32.totalorder %s22, 0
      %p43 = por %p41, %p42
      %p44 = scmp.ne.s32.totalorder %s30, %s31
      %p45 = scmp.eq.s32.totalorder %s23, 1
      %p46 = por %p44, %p45
      %p48 = scmp.ne.s32.totalorder %s31, %s47
      %p49 = scmp.eq.s32.totalorder %s23, 0
      %p50 = por %p48, %p49
      %s52 = sadd.s32 %s51, 1
      %p55 = scmp.eq.s32.totalorder %s17, 1
      %p56 = scmp.ne.s32.totalorder %s51, %s53
      %p57 = scmp.eq.s32.totalorder %s17, 0
      %p58 = por %p56, %p57
      %p59 = scmp.ne.s32.totalorder %s51, %s53
      %p60 = scmp.eq.s32.totalorder %s22, 1
      %p61 = por %p59, %p60
      %p62 = scmp.ne.s32.totalorder %s53, %s54
      %p63 = scmp.eq.s32.totalorder %s22, 0
      %p64 = por %p62, %p63
      %p65 = scmp.ne.s32.totalorder %s53, %s54
      %p66 = scmp.eq.s32.totalorder %s23, 1
      %p67 = por %p65, %p66
      %p69 = scmp.ne.s32.totalorder %s54, %s68
      %p70 = scmp.eq.s32.totalorder %s23, 0
      %p71 = por %p69, %p70
      %s73 = sadd.s32 %s72, 1
      %p76 = scmp.eq.s32.totalorder %s17, 1
      %p77 = scmp.ne.s32.totalorder %s72, %s74
      %p78 = scmp.eq.s32.totalorder %s17, 0
      %p79 = por %p77, %p78
      %p80 = scmp.ne.s32.totalorder %s72, %s74
      %p81 = scmp.eq.s32.totalorder %s22, 1
      %p82 = por %p80, %p81
      %p83 = scmp.ne.s32.totalorder %s74, %s75
      %p84 = scmp.eq.s32.totalorder %s22, 0
      %p85 = por %p83, %p84
      %p86 = scmp.ne.s32.totalorder %s74, %s75
      %p87 = scmp.eq.s32.totalorder %s23, 1
      %p88 = por %p86, %p87
      %p90 = scmp.ne.s32.totalorder %s75, %s89
      %p91 = scmp.eq.s32.totalorder %s23, 0
      %p92 = por %p90, %p91
      %s94 = sadd.s32 %s93, 1
      %p97 = scmp.eq.s32.totalorder %s17, 1
      %p98 = scmp.ne.s32.totalorder %s93, %s95
      %p99 = scmp.eq.s32.totalorder %s17, 0
      %p100 = por %p98, %p99
      %p101 = scmp.ne.s32.totalorder %s93, %s95
      %p102 = scmp.eq.s32.totalorder %s22, 1
      %p103 = por %p101, %p102
      %p104 = scmp.ne.s32.totalorder %s95, %s96
      %p105 = scmp.eq.s32.totalorder %s22, 0
      %p106 = por %p104, %p105
      %p107 = scmp.ne.s32.totalorder %s95, %s96
      %p108 = scmp.eq.s32.totalorder %s23, 1
      %p109 = por %p107, %p108
      %p111 = scmp.ne.s32.totalorder %s96, %s110
      %p112 = scmp.eq.s32.totalorder %s23, 0
      %p113 = por %p111, %p112
      %s115 = sadd.s32 %s114, 1
      %p118 = scmp.eq.s32.totalorder %s17, 1
      %p119 = scmp.ne.s32.totalorder %s114, %s116
      %p120 = scmp.eq.s32.totalorder %s17, 0
      %p121 = por %p119, %p120
      %p122 = scmp.ne.s32.totalorder %s114, %s116
      %p123 = scmp.eq.s32.totalorder %s22, 1
      %p124 = por %p122, %p123
      %p125 = scmp.ne.s32.totalorder %s116, %s117
      %p126 = scmp.eq.s32.totalorder %s22, 0
      %p127 = por %p125, %p126
      %p128 = scmp.ne.s32.totalorder %s116, %s117
      %p129 = scmp.eq.s32.totalorder %s23, 1
      %p130 = por %p128, %p129
      %p132 = scmp.ne.s32.totalorder %s117, %s131
      %p133 = scmp.eq.s32.totalorder %s23, 0
      %p134 = por %p132, %p133
      %s135 = ssub.s32 %s17, %s24
      %p136 = scmp.eq.s32.totalorder %s135, 0
      %s138 = sadd.s32 %s137, 1
      %s139 = scalar_select %p136, %s137, %s138
      %p142 = pneg %p136
      %p143 = scmp.eq.s32.totalorder %s17, 1
      %p144 = por %p142, %p143
      %p145 = scmp.ne.s32.totalorder %s137, %s140
      %p146 = scmp.eq.s32.totalorder %s17, 0
      %p147 = por %p145, %p146
      %p148 = scmp.ne.s32.totalorder %s137, %s140
      %p149 = scmp.eq.s32.totalorder %s22, 1
      %p150 = por %p148, %p149
      %p151 = scmp.ne.s32.totalorder %s140, %s141
      %p152 = scmp.eq.s32.totalorder %s22, 0
      %p153 = por %p151, %p152
      %p154 = scmp.ne.s32.totalorder %s140, %s141
      %p155 = scmp.eq.s32.totalorder %s23, 1
      %p156 = por %p154, %p155
      %p158 = scmp.ne.s32.totalorder %s141, %s157
      %p159 = scmp.eq.s32.totalorder %s23, 0
      %p160 = por %p158, %p159
      %p161 = scmp.le.s32.totalorder 1, %s17
      %p162 = scmp.lt.s32.totalorder %s17, 3
      %p163 = pnand %p161, %p162
      %p164 = pneg %p163
      // Predicated region
      $region9: #{tpu_custom_call.1} parent=5 // pred_check
        _
      $region10: #{tpu_custom_call.1} parent=5 // pred_check_branch
        %166 = sbr.rel (%p163) target = $region12
      $region11: #{tpu_custom_call.1} parent=5 // pred_region
        %s167 = ssub.s32 %s17, 1
        // Predicated region
        $region13: #{tpu_custom_call.1} parent=11 // pred_check
          %p168 = pneg %p64
        $region14: #{tpu_custom_call.1} parent=11 // pred_check_branch
          %170 = sbr.rel (%p168) target = $region16
        $region15: #{tpu_custom_call.1} parent=11 // pred_region
          _
        $region16: #{tpu_custom_call.1} parent=11 // pred_fallthru
          _
        // Predicated region
        $region17: #{tpu_custom_call.1} parent=11 // pred_check
          %p171 = pneg %p85
        $region18: #{tpu_custom_call.1} parent=11 // pred_check_branch
          %173 = sbr.rel (%p171) target = $region20
        $region19: #{tpu_custom_call.1} parent=11 // pred_region
          _
        $region20: #{tpu_custom_call.1} parent=11 // pred_fallthru
          _
        // Predicated region
        $region21: #{tpu_custom_call.1} parent=11 // pred_check
          %p174 = pneg %p106
        $region22: #{tpu_custom_call.1} parent=11 // pred_check_branch
          %176 = sbr.rel (%p174) target = $region24
        $region23: #{tpu_custom_call.1} parent=11 // pred_region
          _
        $region24: #{tpu_custom_call.1} parent=11 // pred_fallthru
          _
        // Predicated region
        $region25: #{tpu_custom_call.1} parent=11 // pred_check
          %p177 = pneg %p127
        $region26: #{tpu_custom_call.1} parent=11 // pred_check_branch
          %179 = sbr.rel (%p177) target = $region28
        $region27: #{tpu_custom_call.1} parent=11 // pred_region
          _
        $region28: #{tpu_custom_call.1} parent=11 // pred_fallthru
          _
      $region12: #{tpu_custom_call.1} parent=5 // pred_fallthru
        _
      %p180 = scmp.lt.s32.totalorder %s17, 2
      // Predicated region
      $region29: #{tpu_custom_call.1} parent=5 // pred_check
        %p181 = pneg %p180
      $region30: #{tpu_custom_call.1} parent=5 // pred_check_branch
        %183 = sbr.rel (%p181) target = $region32
      $region31: #{tpu_custom_call.1} parent=5 // pred_region
        // Predicated region
        $region33: #{tpu_custom_call.1} parent=31 // pred_check
          %p184 = pneg %p37
        $region34: #{tpu_custom_call.1} parent=31 // pred_check_branch
          %186 = sbr.rel (%p184) target = $region36
        $region35: #{tpu_custom_call.1} parent=31 // pred_region
          %s187 = sand.u32 %s27, 1
          %s188 = scalar_lea.sflag [#allocation3], %s187
          %s189 = sand.u32 %s27, 1
          %s190 = smul.addr %s189, 16
          %s191 = scalar_lea.vmem [#allocation2], %s190
          %s193 = ssub.s32 256, 256
          %194 = vsyncadd %s188, %s193
          %s195 = smul.addr %s17, 2
          %s196 = smul.addr %s195, 128
          %s197 = scalar_lea.hbm %s0, %s196
          %s199 = sshll.u32 %s191, 4
          %s200 = int_to_ptr.vmem [resolvable:$true] %s199
          %202 = dma.hbm_to_vmem [thread:$0]  %s197, 256, %s200, %s188
        $region36: #{tpu_custom_call.1} parent=31 // pred_fallthru
          _
      $region32: #{tpu_custom_call.1} parent=5 // pred_fallthru
        _
      %p203 = scmp.le.s32.totalorder 1, %s17
      %p204 = scmp.lt.s32.totalorder %s17, 3
      %p205 = pnand %p203, %p204
      %p206 = pneg %p205
      // Predicated region
      $region37: #{tpu_custom_call.1} parent=5 // pred_check
        _
      $region38: #{tpu_custom_call.1} parent=5 // pred_check_branch
        %208 = sbr.rel (%p205) target = $region40
      $region39: #{tpu_custom_call.1} parent=5 // pred_region
        %s209 = ssub.s32 %s17, 1
        %s210 = sand.u32 %s30, 1
        %s211 = scalar_lea.sflag [#allocation3], %s210
        %s212 = sand.u32 %s30, 1
        %s213 = smul.addr %s212, 16
        %s214 = scalar_lea.vmem [#allocation2], %s213
        // Predicated region
        $region41: #{tpu_custom_call.1} parent=39 // pred_check
          %p215 = pneg %p43
        $region42: #{tpu_custom_call.1} parent=39 // pred_check_branch
          %217 = sbr.rel (%p215) target = $region44
        $region43: #{tpu_custom_call.1} parent=39 // pred_region
          %218 = dma.done %s211, 256
        $region44: #{tpu_custom_call.1} parent=39 // pred_fallthru
          _
        %s219 = sand.u32 %s30, 1
        %s220 = scalar_lea.sflag [#allocation3], %s219
        %s221 = sand.u32 %s30, 1
        %s222 = smul.addr %s221, 16
        %s223 = scalar_lea.vmem [#allocation2], %s222
        %p224 = pneg %p43
        %p225 = pneg %p40
        %p226 = pneg %p64
        %p227 = pneg %p61
        %p228 = pneg %p85
        %p229 = pneg %p82
        %p230 = pneg %p106
        %p231 = pneg %p103
        %p232 = pneg %p127
        %p233 = pneg %p124
        %p234 = pneg %p153
        %p235 = pneg %p150
        %s236 = sand.u32 %s140, 1
        %s237 = scalar_lea.sflag [#allocation4], %s236
        %s238 = sand.u32 %s140, 1
        %s239 = smul.addr %s238, 16
        %s240 = scalar_lea.vmem [#allocation5], %s239
        %v241 = vld [vmem:[%s214] sm:$0xff]
        %v242 = vld [vmem:[%s214 + $0x8] sm:$0xff]
        %v243 = vadd.f32 %v241, %v242
        %244 = vadd.xlane.f32.xlu0 %v243
        %v245 = vpop.xlane.xlu0 %244
        %v246 = vld [vmem:[%s1] sm:$0xf]
        %v247 = vld [vmem:[%s2] sm:$0xf]
        %vm248 = vcmask 64512
        %v250 = vsel %vm248, %v246, 0
        %252 = vmatprep.subr.mxu0 0.0
        %253 = vmatpush1.msra.mxu0 %v245
        %254 = vmatprep.subr.mxu0 0.0
        %255 = vmatpush1.msra.mxu0 0.0
        %256 = vmatprep.subr.mxu0 0.0
        %257 = vmatpush1.msra.mxu0 0.0
        %258 = vmatprep.subr.mxu0 0.0
        %259 = vmatpush1.msra.mxu0 0.0
        %260 = vmatprep.subr.mxu0 0.0
        %261 = vmatpush1.msra.mxu0 0.0
        %262 = vmatprep.subr.mxu0 0.0
        %263 = vmatpush1.msra.mxu0 0.0
        %264 = vmatprep.subr.mxu0 0.0
        %265 = vmatpush1.msra.mxu0 0.0
        %266 = vmatprep.subr.mxu0 0.0
        %267 = vmatpush1.msra.mxu0 0.0
        %268 = vmatprep.subr.mxu0 0.0
        %269 = vmatpush1.msra.mxu0 0.0
        %270 = vmatprep.subr.mxu0 0.0
        %271 = vmatpush1.msra.mxu0 0.0
        %272 = vmatprep.subr.mxu0 0.0
        %273 = vmatpush1.msra.mxu0 0.0
        %274 = vmatprep.subr.mxu0 0.0
        %275 = vmatpush1.msra.mxu0 0.0
        %276 = vmatprep.subr.mxu0 0.0
        %277 = vmatpush1.msra.mxu0 0.0
        %278 = vmatprep.subr.mxu0 0.0
        %279 = vmatpush1.msra.mxu0 0.0
        %280 = vmatprep.subr.mxu0 0.0
        %281 = vmatpush1.msra.mxu0 0.0
        %282 = vmatprep.subr.mxu0 0.0
        %283 = vmatpush1.msra.mxu0 0.0
        %284 = vmatprep.subr.mxu0 0.0
        %285 = vmatpush1.msra.mxu0 0.0
        %286 = vmatprep.subr.mxu0 0.0
        %287 = vmatpush1.msra.mxu0 0.0
        %288 = vmatprep.subr.mxu0 0.0
        %289 = vmatpush1.msra.mxu0 0.0
        %290 = vmatprep.subr.mxu0 0.0
        %291 = vmatpush1.msra.mxu0 0.0
        %292 = vmatprep.subr.mxu0 0.0
        %293 = vmatpush1.msra.mxu0 0.0
        %294 = vmatprep.subr.mxu0 0.0
        %295 = vmatpush1.msra.mxu0 0.0
        %296 = vmatprep.subr.mxu0 0.0
        %297 = vmatpush1.msra.mxu0 0.0
        %298 = vmatprep.subr.mxu0 0.0
        %299 = vmatpush1.msra.mxu0 0.0
        %300 = vmatprep.subr.mxu0 0.0
        %301 = vmatpush1.msra.mxu0 0.0
        %302 = vmatprep.subr.mxu0 0.0
        %303 = vmatpush1.msra.mxu0 0.0
        %304 = vmatprep.subr.mxu0 0.0
        %305 = vmatpush1.msra.mxu0 0.0
        %306 = vmatprep.subr.mxu0 0.0
        %307 = vmatpush1.msra.mxu0 0.0
        %308 = vmatprep.subr.mxu0 0.0
        %309 = vmatpush1.msra.mxu0 0.0
        %310 = vmatprep.subr.mxu0 0.0
        %311 = vmatpush1.msra.mxu0 0.0
        %312 = vmatprep.subr.mxu0 0.0
        %313 = vmatpush1.msra.mxu0 0.0
        %314 = vmatprep.subr.mxu0 0.0
        %315 = vmatpush1.msra.mxu0 0.0
        %316 = vmatprep.mubr.f32.mxu0 0.0
        %317 = vmatmul.mubr.f32.gmra.mrb[0].mxu0 %v250
        %v318 = vpop.f32.mrb[0].mxu0
        %v319 = vadd.f32 %v247, %v318
        %v320 = vpop.f32.mrb[0].mxu0
        %321 = vdwg.mxu0
        %v322 = vmax.f32 %v319, 0.0
        %v323 = vld [vmem:[%s3] sm:$0xff]
        %v324 = vld [vmem:[%s4] sm:$0xff]
        %vm325 = vcmask 31744
        %v327 = vsel %vm325, %v323, 0
        %vm329 = vcmask 1043456
        %v331 = vsel %vm329, %v322, 0
        %333 = vmatprep.subr.mxu0 0.0
        %334 = vmatpush1.msra.mxu0 %v331
        %335 = vmatprep.subr.mxu0 0.0
        %336 = vmatpush1.msra.mxu0 0.0
        %337 = vmatprep.subr.mxu0 0.0
        %338 = vmatpush1.msra.mxu0 0.0
        %339 = vmatprep.subr.mxu0 0.0
        %340 = vmatpush1.msra.mxu0 0.0
        %341 = vmatprep.subr.mxu0 0.0
        %342 = vmatpush1.msra.mxu0 0.0
        %343 = vmatprep.subr.mxu0 0.0
        %344 = vmatpush1.msra.mxu0 0.0
        %345 = vmatprep.subr.mxu0 0.0
        %346 = vmatpush1.msra.mxu0 0.0
        %347 = vmatprep.subr.mxu0 0.0
        %348 = vmatpush1.msra.mxu0 0.0
        %349 = vmatprep.subr.mxu0 0.0
        %350 = vmatpush1.msra.mxu0 0.0
        %351 = vmatprep.subr.mxu0 0.0
        %352 = vmatpush1.msra.mxu0 0.0
        %353 = vmatprep.subr.mxu0 0.0
        %354 = vmatpush1.msra.mxu0 0.0
        %355 = vmatprep.subr.mxu0 0.0
        %356 = vmatpush1.msra.mxu0 0.0
        %357 = vmatprep.subr.mxu0 0.0
        %358 = vmatpush1.msra.mxu0 0.0
        %359 = vmatprep.subr.mxu0 0.0
        %360 = vmatpush1.msra.mxu0 0.0
        %361 = vmatprep.subr.mxu0 0.0
        %362 = vmatpush1.msra.mxu0 0.0
        %363 = vmatprep.subr.mxu0 0.0
        %364 = vmatpush1.msra.mxu0 0.0
        %365 = vmatprep.subr.mxu0 0.0
        %366 = vmatpush1.msra.mxu0 0.0
        %367 = vmatprep.subr.mxu0 0.0
        %368 = vmatpush1.msra.mxu0 0.0
        %369 = vmatprep.subr.mxu0 0.0
        %370 = vmatpush1.msra.mxu0 0.0
        %371 = vmatprep.subr.mxu0 0.0
        %372 = vmatpush1.msra.mxu0 0.0
        %373 = vmatprep.subr.mxu0 0.0
        %374 = vmatpush1.msra.mxu0 0.0
        %375 = vmatprep.subr.mxu0 0.0
        %376 = vmatpush1.msra.mxu0 0.0
        %377 = vmatprep.subr.mxu0 0.0
        %378 = vmatpush1.msra.mxu0 0.0
        %379 = vmatprep.subr.mxu0 0.0
        %380 = vmatpush1.msra.mxu0 0.0
        %381 = vmatprep.subr.mxu0 0.0
        %382 = vmatpush1.msra.mxu0 0.0
        %383 = vmatprep.subr.mxu0 0.0
        %384 = vmatpush1.msra.mxu0 0.0
        %385 = vmatprep.subr.mxu0 0.0
        %386 = vmatpush1.msra.mxu0 0.0
        %387 = vmatprep.subr.mxu0 0.0
        %388 = vmatpush1.msra.mxu0 0.0
        %389 = vmatprep.subr.mxu0 0.0
        %390 = vmatpush1.msra.mxu0 0.0
        %391 = vmatprep.subr.mxu0 0.0
        %392 = vmatpush1.msra.mxu0 0.0
        %393 = vmatprep.subr.mxu0 0.0
        %394 = vmatpush1.msra.mxu0 0.0
        %395 = vmatprep.subr.mxu0 0.0
        %396 = vmatpush1.msra.mxu0 0.0
        %397 = vmatprep.mubr.f32.mxu0 0.0
        %398 = vmatmul.mubr.f32.gmra.mrb[0].mxu0 %v327
        %v399 = vpop.f32.mrb[0].mxu0
        %v400 = vadd.f32 %v324, %v399
        %v401 = vpop.f32.mrb[0].mxu0
        %402 = vdwg.mxu0
        %v403 = vxor.u32 %v400, 2147483648
        %v404 = vmul.f32 %v403, 1.442695
        %v405 = vpow.pop %v404
        %v406 = vadd.f32 %v405, 1.0
        %v407 = vrcp.pop %v406
        %v408 = vmul.f32 1.0, %v407
        %410 = vset.pattern.permute.xlu0 0
        %411 = vperm.xlu0 %410, %v408
        %v412 = vpop.permute.xlu0 %411
        %v414 = vmul.f32 %v241, %v412
        %v415 = vmul.f32 %v242, %v412
        %416 = vst [vmem:[%s240] sm:$0xff] %v414
        %417 = vst [vmem:[%s240 + $0x8] sm:$0xff] %v415
        %s418 = sand.u32 %s140, 1
        %s419 = scalar_lea.sflag [#allocation4], %s418
        %s420 = sand.u32 %s140, 1
        %s421 = smul.addr %s420, 16
        %s422 = scalar_lea.vmem [#allocation5], %s421
        // Predicated region
        $region45: #{tpu_custom_call.1} parent=39 // pred_check
          %p423 = pneg %p150
        $region46: #{tpu_custom_call.1} parent=39 // pred_check_branch
          %425 = sbr.rel (%p423) target = $region48
        $region47: #{tpu_custom_call.1} parent=39 // pred_region
          %s427 = ssub.s32 256, 256
          %428 = vsyncadd %s419, %s427
          %s429 = smul.addr %s22, 2
          %s430 = smul.addr %s429, 128
          %s431 = scalar_lea.hbm %s5, %s430
          %s433 = sshll.u32 %s422, 4
          %s434 = int_to_ptr.vmem [resolvable:$true] %s433
          %436 = dma.vmem_to_hbm [thread:$0]  %s434, 256, %s431, %s419
        $region48: #{tpu_custom_call.1} parent=39 // pred_fallthru
          _
      $region40: #{tpu_custom_call.1} parent=5 // pred_fallthru
        _
      %p437 = scmp.le.s32.totalorder 2, %s17
      // Predicated region
      $region49: #{tpu_custom_call.1} parent=5 // pred_check
        %p438 = pneg %p437
      $region50: #{tpu_custom_call.1} parent=5 // pred_check_branch
        %440 = sbr.rel (%p438) target = $region52
      $region51: #{tpu_custom_call.1} parent=5 // pred_region
        %s441 = ssub.s32 %s17, 2
        // Predicated region
        $region53: #{tpu_custom_call.1} parent=51 // pred_check
          %p442 = pneg %p156
        $region54: #{tpu_custom_call.1} parent=51 // pred_check_branch
          %444 = sbr.rel (%p442) target = $region56
        $region55: #{tpu_custom_call.1} parent=51 // pred_region
          %s445 = sand.u32 %s141, 1
          %s446 = scalar_lea.sflag [#allocation4], %s445
          %s447 = sand.u32 %s141, 1
          %s448 = smul.addr %s447, 16
          %s449 = scalar_lea.vmem [#allocation5], %s448
          %450 = dma.done %s446, 256
        $region56: #{tpu_custom_call.1} parent=51 // pred_fallthru
          _
      $region52: #{tpu_custom_call.1} parent=5 // pred_fallthru
        _
    $region6: #{tpu_custom_call.1} parent=1 // loop_footer
      %s21 = sadd.s32 1, %s17
    $region7: #{tpu_custom_call.1} parent=1 // loop_footer_branch
      %16 = sbr.rel target = $region3
    $region8: #{tpu_custom_call.1} parent=1 // loop_exit
      _
    %451 = vsyncpa [#allocation3], 1
    %s452 = scalar_lea.sflag [#allocation3], 1
    %453 = vsyncpa %s452, 1
    %454 = vsyncpa [#allocation4], 1
    %s455 = scalar_lea.sflag [#allocation4], 1
    %456 = vsyncpa %s455, 1

</llo_original>
